<compile_context>
chip_gen: v6e
topology: v6e:2x2x1
jax: 0.10.0
libtpu: 0.0.40
codegen_flags: <defaults>
</compile_context>

<pallas_src>
import functools

import numpy as np
import jax
import jax.numpy as jnp
from jax.experimental import pallas as pl
from jax.experimental.pallas import tpu as pltpu


_TILE_BYTES = 8 * 1024 * 1024          # target bytes per (tr, tt) waveform tile
_VMEM_LIMIT_BYTES = 40 * 1024 * 1024   # 2x double-buffered 8 MiB in+out tiles + slack
_ROW_TILE_MAX = 256                    # selection-granularity cap (rows per block)
_MIN_PALLAS_ELEMS = 8 * 1024           # below this, plain XLA wins (dispatch overhead)


def _cdiv(a, b):
    return -(-a // b)


def _round_up(x, m):
    return _cdiv(x, m) * m


def _identity_transform(x):
    # apply_transform() is abstract in BaseWaveformTransform -> identity.
    return x


def _pick_tiles(R, T, itemsize, tile_bytes):
    """Budget-driven (tr, tt): lane-dense time tile, dtype-packed row tile."""
    sub = 8 * max(1, 4 // itemsize)            # 8 rows f32, 16 bf16, 32 int8
    t_full = _round_up(T, 128)
    # Grow the time tile first (keeps row-block selection as fine as possible).
    tt = min(t_full, max(128, (tile_bytes // (sub * itemsize)) // 128 * 128))
    # If the time axis alone can't fill the budget, grow rows (coarser selection,
    # but DMA efficiency wins for short clips).
    tr_fill = max(sub, (tile_bytes // (tt * itemsize)) // sub * sub)
    tr = min(_ROW_TILE_MAX, _round_up(R, sub), tr_fill)
    return tr, tt


@functools.lru_cache(maxsize=None)
def _build_masked_apply(R, T, dtype_str, tr, tt, n_sel_blocks, n_time_blocks,
                        transform_fn):
    dtype = np.dtype(dtype_str)
    itemsize = dtype.itemsize

    def kernel(sel_ref, mask_ref, x_ref, o_ref):
        # sel_ref : SMEM (n_sel_blocks,) int32 -- selected row-block indices
        #           (only consumed by the index_maps).
        # mask_ref: VMEM (tr, 1) int32         -- per-row should_apply flags.
        # x_ref / o_ref: VMEM (tr, tt) tiles; o aliases x's HBM buffer.
        del sel_ref
        x = x_ref[...]
        # apply_transform() is abstract in BaseWaveformTransform -> identity by default.
        # TODO(synk): replace with a concrete subclass's per-sample transform.
        transformed = transform_fn(x).astype(x.dtype)
        # cloned_samples[should_apply] = perturbed.samples  <=>  per-row masked blend.
        o_ref[...] = jnp.where(mask_ref[...] != 0, transformed, x)

    call = pl.pallas_call(
        kernel,
        out_shape=jax.ShapeDtypeStruct((R, T), dtype),
        grid_spec=pltpu.PrefetchScalarGridSpec(
            num_scalar_prefetch=1,               # sel_blocks -> SMEM
            grid=(n_sel_blocks, n_time_blocks),  # visit ONLY selected row blocks
            in_specs=[
                pl.BlockSpec((tr, 1), lambda r, t, sel: (sel[r], 0)),
                pl.BlockSpec((tr, tt), lambda r, t, sel: (sel[r], t)),
            ],
            out_specs=pl.BlockSpec((tr, tt), lambda r, t, sel: (sel[r], t)),
        ),
        # Flat input order is (sel_blocks, mask_col, x2d) -> alias x2d (index 2)
        # to the output so unvisited (unselected) row blocks keep their samples.
        input_output_aliases={2: 0},
        compiler_params=pltpu.CompilerParams(
            # Every (r, t) block is independent -> both axes parallel (v7x megacore).
            dimension_semantics=("parallel", "parallel"),
            vmem_limit_bytes=_VMEM_LIMIT_BYTES,
        ),
        cost_estimate=pl.CostEstimate(
            flops=int(n_sel_blocks * tr) * int(n_time_blocks * tt),
            transcendentals=0,
            bytes_accessed=int(2 * n_sel_blocks * tr * T * itemsize),
        ),
    )

    def run(sel_blocks, mask_col, x2d):
        return call(sel_blocks, mask_col, x2d)

    # Donate x2d so the input->output aliasing is realized in place
    # (no extra full-size HBM copy / allocation).
    return jax.jit(run, donate_argnums=(2,))


def masked_apply_2d(x2d, row_mask, transform_fn=None, tile_bytes=_TILE_BYTES):
    """Masked per-row transform of (R, T) waveform rows.

    `row_mask` must be concrete (forward() is not jitted).  Rows with mask==0
    are left untouched; row blocks with no selected row generate no HBM traffic.
    NOTE: x2d's buffer is donated to the result.
    """
    if transform_fn is None:
        transform_fn = _identity_transform
    R, T = x2d.shape
    if R == 0 or T == 0:
        return x2d

    mask_np = np.asarray(jax.device_get(row_mask)).astype(np.int32).reshape(R)
    if not mask_np.any():
        # Matches the module's `if should_apply.any()` early-out.
        return x2d

    itemsize = np.dtype(x2d.dtype).itemsize
    tr, tt = _pick_tiles(R, T, itemsize, tile_bytes)
    n_row_blocks = _cdiv(R, tr)
    n_time_blocks = _cdiv(T, tt)
    r_pad = n_row_blocks * tr

    # Host-side compaction of selected row-block indices (mask is concrete);
    # only the tiny mask is padded -- the waveform itself is never padded.
    mask_pad = np.zeros((r_pad,), np.int32)
    mask_pad[:R] = mask_np
    sel = np.flatnonzero(mask_pad.reshape(n_row_blocks, tr).max(axis=1)).astype(np.int32)
    if sel.size == 0:
        return x2d

    run = _build_masked_apply(
        int(R), int(T), str(np.dtype(x2d.dtype)), int(tr), int(tt),
        int(sel.size), int(n_time_blocks), transform_fn)
    return run(jnp.asarray(sel), jnp.asarray(mask_pad.reshape(r_pad, 1)), x2d)


class ModeNotSupportedException(Exception):
    pass


class MultichannelAudioNotSupportedException(Exception):
    pass


class BaseWaveformTransform:
    supported_modes = {"per_batch", "per_example", "per_channel"}
    supports_multichannel = True
    requires_sample_rate = True

    def __init__(self, mode="per_example", p=0.5, p_mode=None,
                 sample_rate=None, output_type="tensor"):
        assert 0.0 <= p <= 1.0
        if mode not in self.supported_modes:
            raise ModeNotSupportedException(
                f"{self.__class__.__name__} does not support mode {mode}")
        self.mode = mode
        self.p = p
        self.p_mode = p_mode if p_mode is not None else mode
        if self.p_mode == "per_batch":
            assert self.mode in ("per_batch", "per_example", "per_channel")
        elif self.p_mode == "per_example":
            assert self.mode in ("per_example", "per_channel")
        elif self.p_mode == "per_channel":
            assert self.mode == "per_channel"
        else:
            raise Exception(f"Unknown p_mode {self.p_mode}")
        self.sample_rate = sample_rate
        self.output_type = output_type  # TODO(synk): 'dict' (ObjectDict) output not implemented
        self.training = True
        self.are_parameters_frozen = False
        self.transform_parameters = {}

    def freeze_parameters(self):
        self.are_parameters_frozen = True

    def unfreeze_parameters(self):
        self.are_parameters_frozen = False

    def _elementwise_transform(self, x):
        # apply_transform() is abstract in the base class -> identity.
        # TODO(synk): override in a subclass with the real per-sample transform.
        return x

    def forward(self, samples, sample_rate=None, *, rng_key):
        if not self.training:
            return samples
        if samples.ndim != 3:
            raise RuntimeError("expected samples of shape (batch, channels, time)")
        batch_size, num_channels, num_samples = samples.shape
        if batch_size * num_channels * num_samples == 0:
            return samples
        if num_channels > 1 and not self.supports_multichannel:
            raise MultichannelAudioNotSupportedException(
                f"{self.__class__.__name__} only supports mono audio")
        sample_rate = sample_rate or self.sample_rate
        if sample_rate is None and self.requires_sample_rate:
            raise RuntimeError("sample_rate is required")

        # ---- Bernoulli(p) should_apply sampling (p_mode granularity) ----
        if self.p_mode == "per_example":
            p_sample_size = batch_size
        elif self.p_mode == "per_channel":
            p_sample_size = batch_size * num_channels
        elif self.p_mode == "per_batch":
            p_sample_size = 1
        else:
            raise Exception(f"Unknown p_mode {self.p_mode}")

        if not self.are_parameters_frozen:
            should_apply = jax.random.bernoulli(rng_key, self.p, (p_sample_size,))
            self.transform_parameters = {"should_apply": should_apply}
        else:
            should_apply = self.transform_parameters["should_apply"]

        # Broadcast flags to (B, C) selection granularity.
        if self.p_mode == "per_batch":
            mask_bc = jnp.broadcast_to(should_apply.reshape(1, 1),
                                       (batch_size, num_channels))
        elif self.p_mode == "per_example":
            mask_bc = jnp.broadcast_to(should_apply.reshape(batch_size, 1),
                                       (batch_size, num_channels))
        else:  # per_channel
            mask_bc = should_apply.reshape(batch_size, num_channels)
        mask_bc = mask_bc.astype(jnp.int32)

        # The selected-block compaction needs a concrete mask (forward is not
        # meant to be jitted); when traced, fall back to a plain XLA blend.
        try:
            np.asarray(jax.device_get(mask_bc))
            mask_is_concrete = True
        except Exception:
            mask_is_concrete = False

        total_elems = batch_size * num_channels * num_samples
        if (not mask_is_concrete) or total_elems < _MIN_PALLAS_ELEMS:
            # Tiny / traced input: pallas dispatch overhead dominates -> XLA blend
            # (shares _elementwise_transform so it cannot drift from the kernel).
            transformed = self._elementwise_transform(samples)
            return jnp.where(mask_bc[:, :, None] != 0, transformed, samples)

        # ---- hot path: flatten to (B*C, T) rows and run the Pallas masked apply ----
        x2d = samples.reshape(batch_size * num_channels, num_samples)
        row_mask = mask_bc.reshape(batch_size * num_channels)
        out2d = masked_apply_2d(x2d, row_mask,
                                transform_fn=self._elementwise_transform)
        return out2d.reshape(batch_size, num_channels, num_samples)

    __call__ = forward


def _gain_offset_transform(x):
    # Non-identity stand-in for a subclass apply_transform (test only).
    return 0.5 * x + 1.0


if __name__ == "__main__":
    key = jax.random.PRNGKey(0)
    k_data, k_bern, k2, k3 = jax.random.split(key, 4)

    # 1) Module forward: base-class apply_transform is identity, so whatever the
    #    Bernoulli mask selects, output must equal input.
    B, C, T = 2, 4, 2048
    samples = jax.random.normal(k_data, (B, C, T), dtype=jnp.float32)
    samples_np = np.asarray(samples)  # host reference (x2d buffer is donated to the kernel)
    transform = BaseWaveformTransform(mode="per_example", p=0.5,
                                      sample_rate=16000, output_type="tensor")
    out = jax.block_until_ready(transform(samples, sample_rate=16000, rng_key=k_bern))
    assert out.shape == (B, C, T)
    assert out.dtype == samples_np.dtype
    assert np.allclose(np.asarray(out), samples_np)

    # 2) Non-identity transform on an unaligned shape: checks mask polarity,
    #    ragged row/time boundary blocks and the per-row blend (no jnp.pad path).
    x2d = jax.random.normal(k2, (10, 1000), dtype=jnp.float32)
    row_mask = (jnp.arange(10) % 2).astype(jnp.int32)
    ref2d = np.asarray(jnp.where(row_mask[:, None] != 0, _gain_offset_transform(x2d), x2d))
    out2d = jax.block_until_ready(
        masked_apply_2d(x2d, row_mask, transform_fn=_gain_offset_transform))
    assert out2d.shape == (10, 1000)
    assert np.allclose(np.asarray(out2d), ref2d, atol=1e-6)

    # 3) Multiple row blocks with some fully unselected: exercises host-side block
    #    compaction + input/output aliasing (skipped blocks stay untouched in place).
    R3, T3 = 64, 1024
    x3 = jax.random.normal(k3, (R3, T3), dtype=jnp.float32)
    m3 = np.zeros((R3,), np.int32)
    m3[0:8] = 1
    m3[33] = 1
    ref3 = np.asarray(jnp.where(jnp.asarray(m3)[:, None] != 0,
                                _gain_offset_transform(x3), x3))
    out3 = jax.block_until_ready(
        masked_apply_2d(x3, jnp.asarray(m3), transform_fn=_gain_offset_transform,
                        tile_bytes=64 * 1024))  # force tr=16 -> 4 row blocks, 2 selected
    assert np.allclose(np.asarray(out3), ref3, atol=1e-6)

    print("KERNEL_OK")
</pallas_src>

<mosaic_0001>
module attributes {stable_mosaic.version = 11 : i64} {
  func.func @kernel(%arg0: i32, %arg1: i32, %arg2: memref<1xi32, #tpu.memory_space<smem>>, %arg3: memref<8x1xi32, #tpu.memory_space<vmem>>, %arg4: memref<8x2048xf32, #tpu.memory_space<vmem>>, %arg5: memref<8x2048xf32, #tpu.memory_space<vmem>>) attributes {dimension_semantics = [#tpu.dimension_semantics<parallel>, #tpu.dimension_semantics<parallel>], iteration_bounds = array<i64: 1, 1>, scalar_prefetch = 1 : i64, scratch_operands = 0 : i64, tpu.core_type = #tpu.core_type<tc>, window_params = [{transform_indices = @transform_0, window_bounds = array<i64: 8, 1>}, {transform_indices = @transform_1, window_bounds = array<i64: 8, 2048>}, {transform_indices = @transform_2, window_bounds = array<i64: 8, 2048>}]} {
    %c0 = arith.constant 0 : index
    %c0_0 = arith.constant 0 : index
    %0 = vector.load %arg4[%c0, %c0_0] : memref<8x2048xf32, #tpu.memory_space<vmem>>, vector<8x2048xf32>
    %c0_1 = arith.constant 0 : index
    %c0_2 = arith.constant 0 : index
    %1 = vector.load %arg3[%c0_1, %c0_2] : memref<8x1xi32, #tpu.memory_space<vmem>>, vector<8x1xi32>
    %c0_i32 = arith.constant 0 : i32
    %2 = vector.broadcast %c0_i32 : i32 to vector<8x1xi32>
    %3 = arith.cmpi ne, %1, %2 : vector<8x1xi32>
    %4 = vector.shape_cast %3 : vector<8x1xi1> to vector<8x1xi1>
    %5 = vector.broadcast %4 : vector<8x1xi1> to vector<8x2048xi1>
    %6 = arith.select %5, %0, %0 : vector<8x2048xi1>, vector<8x2048xf32>
    %c0_3 = arith.constant 0 : index
    %c0_4 = arith.constant 0 : index
    %7 = vector.load %arg5[%c0_3, %c0_4] : memref<8x2048xf32, #tpu.memory_space<vmem>>, vector<8x2048xf32>
    tpu.vector_store %arg5[%c0_3, %c0_4], %6 {strides = array<i32>} : memref<8x2048xf32, #tpu.memory_space<vmem>>, vector<8x2048xf32>,
    return
  }
  func.func @transform_0(%arg0: i32, %arg1: i32, %arg2: memref<1xi32, #tpu.memory_space<smem>>) -> (i32, i32) {
    %0 = arith.index_cast %arg0 : i32 to index
    %1 = memref.load %arg2[%0] : memref<1xi32, #tpu.memory_space<smem>>
    %c0_i32 = arith.constant 0 : i32
    %c0_i32_0 = arith.constant 0 : i32
    return %1, %c0_i32 : i32, i32
  }
  func.func @transform_1(%arg0: i32, %arg1: i32, %arg2: memref<1xi32, #tpu.memory_space<smem>>) -> (i32, i32) {
    %0 = arith.index_cast %arg0 : i32 to index
    %1 = memref.load %arg2[%0] : memref<1xi32, #tpu.memory_space<smem>>
    %c0_i32 = arith.constant 0 : i32
    return %1, %arg1 : i32, i32
  }
  func.func @transform_2(%arg0: i32, %arg1: i32, %arg2: memref<1xi32, #tpu.memory_space<smem>>) -> (i32, i32) {
    %0 = arith.index_cast %arg0 : i32 to index
    %1 = memref.load %arg2[%0] : memref<1xi32, #tpu.memory_space<smem>>
    %c0_i32 = arith.constant 0 : i32
    return %1, %arg1 : i32, i32
  }
}

</mosaic_0001>

<llo_original>
// kernel: run.1
$region0: #{run.1}
  #allocation0 [shape = 'u32[]', space=smem, size = 0x4, offset = 0x4, fixed_abs, tag = 'smem constant byte address 0x4 - core index']
  #allocation1 [shape = 'u32[144,128]{1,0:T(1,128)}', space=vmem, size = 0x12000, scoped, tag = 'internal scratch']
  #allocation2 [shape = 's32[1]{0}', space=sflag, size = 0x4, scoped, tag = 'scoped memory for run.1']
  #allocation3 [shape = 's32[1]{0:T(128)S(6)}', space=smem, size = 0x200, scoped, tag = 'prefetched SMEM operand 0']
  %s0 = inlined_call_operand.<no memory space> [shape: s32[1], index: 0, kind: input, shape index: {}]
  %s1 = inlined_call_operand.vmem [shape: s32[8,1], index: 1, kind: input, shape index: {}]
  %s2 = inlined_call_operand.hbm [shape: f32[8,2048], index: 2, kind: input, shape index: {}, may-alias: {2,3}]
  %s3 = inlined_call_operand.hbm [shape: f32[8,2048], index: 3, kind: output, shape index: {}, may-alias: {2,3}]
  %s4 = sld [smem:[#allocation0]]
  $region22: #{run.1} parent=0
    _
  %s6 = ssub.s32 1, %s4
  %s7 = scalar_select 0, %s6, %s4
  %8 = sst [smem:[#allocation3]] %s0
  $region1: #{run.1} parent=0
    #allocation4 [shape = 'u8[65536]{0}', space=vmem, size = 0x10000, scoped, tag = 'input window, operand 2, single buffered']
    #allocation5 [shape = 's32[1]{0}', space=sflag, size = 0x4, scoped, tag = 'scoped memory for run.1']
    #allocation6 [shape = 's32[1]{0}', space=sflag, size = 0x4, scoped, tag = 'scoped memory for run.1']
    #allocation7 [shape = 'u8[65536]{0}', space=vmem, size = 0x10000, scoped, tag = 'output window, operand 0, single buffered']
    %9 = vsyncpa [#allocation5], 0
    %10 = vsyncpa [#allocation6], 0
    // Predicated region
    $region2: #{run.1} parent=1 // pred_check
      _
    $region3: #{run.1} parent=1 // pred_check_branch
      %12 = sbr.rel (0) target = $region5
    $region4: #{run.1} parent=1 // pred_region
      %s13 = sld [smem:[#allocation3]]
      %p14 = scmp.lt.s32.totalorder %s13, 0
      %s15 = scalar_select %p14, %s13, 0
      %s16 = smul.addr %s15, 8
      %s17 = scalar_lea.vmem %s1, %s16
      %s18 = sld [smem:[#allocation3]]
    $region5: #{run.1} parent=1 // pred_fallthru
      _
    // Predicated region
    $region6: #{run.1} parent=1 // pred_check
      _
    $region7: #{run.1} parent=1 // pred_check_branch
      %20 = sbr.rel (0) target = $region9
    $region8: #{run.1} parent=1 // pred_region
      %s21 = sld [smem:[#allocation3]]
      %s23 = ssub.s32 2048, 2048
      %24 = vsyncadd [#allocation5], %s23
      %s25 = smul.addr %s21, 16
      %s26 = smul.addr %s25, 128
      %s27 = scalar_lea.hbm %s2, %s26
      %s29 = sshll.u32 [#allocation4], 4
      %s30 = int_to_ptr.vmem [resolvable:$true] %s29
      %32 = dma.hbm_to_vmem [thread:$0]  %s27, 2048, %s30, [#allocation5]
    $region9: #{run.1} parent=1 // pred_fallthru
      _
    // Predicated region
    $region10: #{run.1} parent=1 // pred_check
      _
    $region11: #{run.1} parent=1 // pred_check_branch
      %34 = sbr.rel (0) target = $region13
    $region12: #{run.1} parent=1 // pred_region
      %35 = dma.done [#allocation5], 2048
    $region13: #{run.1} parent=1 // pred_fallthru
      _
    %s36 = sld [smem:[#allocation3]]
    %p37 = scmp.lt.s32.totalorder %s36, 0
    %s38 = scalar_select %p37, %s36, 0
    %s39 = smul.addr %s38, 8
    %s40 = scalar_lea.vmem %s1, %s39
    %s41 = sld [smem:[#allocation3]]
    %p42 = scmp.lt.s32.totalorder %s41, 0
    %s43 = scalar_select %p42, %s41, 0
    %s44 = smul.addr %s43, 8
    %s45 = scalar_lea.vmem %s1, %s44
    %s46 = sld [smem:[#allocation3]]
    %s47 = sld [smem:[#allocation3]]
    %s48 = sld [smem:[#allocation3]]
    %v49 = vld [vmem:[#allocation4] sm:$0xff]
    %v50 = vld [vmem:[#allocation4 + $0x8] sm:$0xff]
    %v51 = vld [vmem:[#allocation4 + $0x10] sm:$0xff]
    %v52 = vld [vmem:[#allocation4 + $0x18] sm:$0xff]
    %v53 = vld [vmem:[#allocation4 + $0x20] sm:$0xff]
    %v54 = vld [vmem:[#allocation4 + $0x28] sm:$0xff]
    %v55 = vld [vmem:[#allocation4 + $0x30] sm:$0xff]
    %v56 = vld [vmem:[#allocation4 + $0x38] sm:$0xff]
    %v57 = vld [vmem:[#allocation4 + $0x40] sm:$0xff]
    %v58 = vld [vmem:[#allocation4 + $0x48] sm:$0xff]
    %v59 = vld [vmem:[#allocation4 + $0x50] sm:$0xff]
    %v60 = vld [vmem:[#allocation4 + $0x58] sm:$0xff]
    %v61 = vld [vmem:[#allocation4 + $0x60] sm:$0xff]
    %v62 = vld [vmem:[#allocation4 + $0x68] sm:$0xff]
    %v63 = vld [vmem:[#allocation4 + $0x70] sm:$0xff]
    %v64 = vld [vmem:[#allocation4 + $0x78] sm:$0xff]
    %65 = vst [vmem:[#allocation7] sm:$0xff] %v49
    %66 = vst [vmem:[#allocation7 + $0x8] sm:$0xff] %v50
    %67 = vst [vmem:[#allocation7 + $0x10] sm:$0xff] %v51
    %68 = vst [vmem:[#allocation7 + $0x18] sm:$0xff] %v52
    %69 = vst [vmem:[#allocation7 + $0x20] sm:$0xff] %v53
    %70 = vst [vmem:[#allocation7 + $0x28] sm:$0xff] %v54
    %71 = vst [vmem:[#allocation7 + $0x30] sm:$0xff] %v55
    %72 = vst [vmem:[#allocation7 + $0x38] sm:$0xff] %v56
    %73 = vst [vmem:[#allocation7 + $0x40] sm:$0xff] %v57
    %74 = vst [vmem:[#allocation7 + $0x48] sm:$0xff] %v58
    %75 = vst [vmem:[#allocation7 + $0x50] sm:$0xff] %v59
    %76 = vst [vmem:[#allocation7 + $0x58] sm:$0xff] %v60
    %77 = vst [vmem:[#allocation7 + $0x60] sm:$0xff] %v61
    %78 = vst [vmem:[#allocation7 + $0x68] sm:$0xff] %v62
    %79 = vst [vmem:[#allocation7 + $0x70] sm:$0xff] %v63
    %80 = vst [vmem:[#allocation7 + $0x78] sm:$0xff] %v64
    // Predicated region
    $region14: #{run.1} parent=1 // pred_check
      _
    $region15: #{run.1} parent=1 // pred_check_branch
      %82 = sbr.rel (0) target = $region17
    $region16: #{run.1} parent=1 // pred_region
      %s83 = sld [smem:[#allocation3]]
      %s85 = ssub.s32 2048, 2048
      %86 = vsyncadd [#allocation6], %s85
      %s87 = smul.addr %s83, 16
      %s88 = smul.addr %s87, 128
      %s89 = scalar_lea.hbm %s3, %s88
      %s91 = sshll.u32 [#allocation7], 4
      %s92 = int_to_ptr.vmem [resolvable:$true] %s91
      %94 = dma.vmem_to_hbm [thread:$0]  %s92, 2048, %s89, [#allocation6]
    $region17: #{run.1} parent=1 // pred_fallthru
      _
    // Predicated region
    $region18: #{run.1} parent=1 // pred_check
      _
    $region19: #{run.1} parent=1 // pred_check_branch
      %96 = sbr.rel (0) target = $region21
    $region20: #{run.1} parent=1 // pred_region
      %97 = dma.done [#allocation6], 2048
    $region21: #{run.1} parent=1 // pred_fallthru
      _
    %98 = vsyncpa [#allocation5], 1
    %99 = vsyncpa [#allocation6], 1

</llo_original>
